<compile_context>
chip_gen: v7x
topology: tpu7x:2x2x1
jax: 0.10.0
libtpu: 0.0.40
codegen_flags: <defaults>
</compile_context>

<pallas_src>
import functools

import jax
import jax.numpy as jnp
from jax.experimental import pallas as pl
from jax.experimental.pallas import tpu as pltpu

BN_EPS = 1e-5          # nn.BatchNorm1d default eps
LEAKY_SLOPE = 0.01     # nn.LeakyReLU default negative_slope
_LANE = 128


def _round_up(x, m):
    return -(-x // m) * m


def _leaky_relu(x):
    return jnp.where(x >= 0, x, LEAKY_SLOPE * x)


# ----------------------------------------------------------------------------
# Kernels
# ----------------------------------------------------------------------------
def _fused_kernel(x_ref, w1_ref, b1_ref, w2_ref, b2_ref, out_ref, *, inv_len):
    """Single pass: pool over L, gate MLP (BN folded), multiply, write out.

    L is the full array extent here, so no lane masking is needed.  A ragged
    last B-tile reads unspecified rows, but each row's result depends only on
    itself and out-of-bounds rows are dropped on writeback.
    """
    x = x_ref[...].astype(jnp.float32)                               # (tb, C, L)
    pooled = jnp.sum(x, axis=-1) * inv_len                           # (tb, C)
    h = jnp.dot(pooled, w1_ref[...],
                preferred_element_type=jnp.float32) + b1_ref[...]
    h = _leaky_relu(h)
    g = jnp.dot(h, w2_ref[...],
                preferred_element_type=jnp.float32) + b2_ref[...]
    g = _leaky_relu(g)
    gate = jax.nn.sigmoid(g)[:, :, None]                             # (tb, C, 1)
    out_ref[...] = (x * gate).astype(out_ref.dtype)


def _reduce_gate_kernel(x_ref, w1_ref, b1_ref, w2_ref, b2_ref,
                        gate_ref, acc_ref, *, inv_len, length, tl):
    """Pass 1 (tiled L): masked partial sums over L; finalize gate at last tile."""
    l = pl.program_id(1)

    @pl.when(l == 0)
    def _():
        acc_ref[...] = jnp.zeros_like(acc_ref)

    x = x_ref[...].astype(jnp.float32)                               # (1, C, tl)
    # Mask the ragged last L tile (out-of-bounds lanes are unspecified).
    lane = jax.lax.broadcasted_iota(jnp.int32, x.shape, 2)
    x = jnp.where(lane < (length - l * tl), x, 0.0)
    acc_ref[...] += jnp.sum(x, axis=-1)

    @pl.when(l == pl.num_programs(1) - 1)
    def _():
        pooled = acc_ref[...] * inv_len                              # (1, C)
        h = jnp.dot(pooled, w1_ref[...],
                    preferred_element_type=jnp.float32) + b1_ref[...]
        h = _leaky_relu(h)
        g = jnp.dot(h, w2_ref[...],
                    preferred_element_type=jnp.float32) + b2_ref[...]
        g = _leaky_relu(g)
        gate_ref[...] = jax.nn.sigmoid(g)[:, :, None]                # (1, C, 1)


def _apply_gate_kernel(x_ref, gate_ref, out_ref):
    """Pass 2: out = gate * x (gate broadcast over lanes). OOB lanes dropped."""
    out_ref[...] = (x_ref[...].astype(jnp.float32)
                    * gate_ref[...]).astype(out_ref.dtype)


# ----------------------------------------------------------------------------
# Budget / tiling helpers
# ----------------------------------------------------------------------------
def _vmem_capacity_bytes():
    try:
        info = pltpu.get_tpu_info()
        for name in ("vmem_capacity_bytes", "vmem_bytes", "vmem_size_bytes"):
            v = getattr(info, name, None)
            if v:
                return int(v)
    except Exception:
        pass
    return 64 << 20   # conservative default (v7x has the smallest VMEM)


def _budgets(block_budget_bytes):
    cap = _vmem_capacity_bytes()
    if cap >= (100 << 20):            # v5e / v6e: 128 MiB physical VMEM
        budget, vmem_cap = 16 << 20, 100 << 20
    else:                             # v7x: 64 MiB physical VMEM
        budget, vmem_cap = 8 << 20, 48 << 20
    if block_budget_bytes is not None:
        budget = int(block_budget_bytes)
    return budget, vmem_cap


# ----------------------------------------------------------------------------
# Wrapper
# ----------------------------------------------------------------------------
def conv_attention(x, params, *, block_budget_bytes=None):
    """x: (B, C, L); params: tuple of 10 arrays (see init_params)."""
    (w1, g1, b1, m1, v1, w2, g2, b2, m2, v2) = params
    B, C, L = x.shape
    inter = w1.shape[0]
    if w1.shape[1] != C or w2.shape[0] != C:
        raise ValueError("ConvAttention requires channels == in_channels "
                         "(y.expand_as(x) in the PyTorch module).")

    # Fold BatchNorm (eval mode) into the 1x1-conv weights and a single bias.
    scale1 = g1 * jax.lax.rsqrt(v1 + BN_EPS)
    scale2 = g2 * jax.lax.rsqrt(v2 + BN_EPS)
    w1f = (w1 * scale1[:, None]).T.astype(jnp.float32)        # (C, inter)
    w2f = (w2 * scale2[:, None]).T.astype(jnp.float32)        # (inter, C)
    bias1 = (b1 - m1 * scale1).reshape(1, inter).astype(jnp.float32)
    bias2 = (b2 - m2 * scale2).reshape(1, C).astype(jnp.float32)

    elem = jnp.dtype(x.dtype).itemsize
    sub = max(1, (8 * 4) // elem)                 # sublane packing (8 f32 / 16 bf16)
    Cp = _round_up(C, sub)
    budget, vmem_cap = _budgets(block_budget_bytes)

    # Padded VMEM bytes of one (1, C, L) slab, and the largest lane tile that
    # fits the per-block budget.
    row_bytes = Cp * _round_up(L, _LANE) * elem
    tl_max = max(_LANE, ((budget // (Cp * elem)) // _LANE) * _LANE)
    fused = (row_bytes <= budget) or (tl_max >= L)

    inv_len = 1.0 / float(L)

    if fused:
        # -------- Single-pass path: read x once, write out once (2|x| traffic).
        tb = max(1, min(B, budget // max(1, row_bytes)))
        if B >= 2:
            tb = min(tb, -(-B // 2))      # >= 2 grid blocks so both v7x TCs work
        grid = (pl.cdiv(B, tb),)
        block_bytes = tb * row_bytes
        vmem_limit = int(min(vmem_cap, max(32 << 20, 4 * block_bytes + (4 << 20))))

        x_spec = pl.BlockSpec((tb, C, L), lambda b: (b, 0, 0))
        wspecs = [pl.BlockSpec((C, inter), lambda b: (0, 0)),
                  pl.BlockSpec((1, inter), lambda b: (0, 0)),
                  pl.BlockSpec((inter, C), lambda b: (0, 0)),
                  pl.BlockSpec((1, C), lambda b: (0, 0))]

        return pl.pallas_call(
            functools.partial(_fused_kernel, inv_len=inv_len),
            out_shape=jax.ShapeDtypeStruct((B, C, L), x.dtype),
            grid_spec=pltpu.PrefetchScalarGridSpec(
                num_scalar_prefetch=0,
                grid=grid,
                in_specs=[x_spec] + wspecs,
                out_specs=x_spec),
            compiler_params=pltpu.CompilerParams(
                dimension_semantics=("parallel",),
                vmem_limit_bytes=vmem_limit),
        )(x, w1f, bias1, w2f, bias2)

    # -------- Two-pass streaming path (a batch row does not fit VMEM).
    nl = pl.cdiv(L, tl_max)
    tl = min(tl_max, _round_up(pl.cdiv(L, nl), _LANE))   # minimize last-tile padding
    grid = (B, pl.cdiv(L, tl))
    block_bytes = Cp * tl * elem
    vmem_limit = int(min(vmem_cap, max(32 << 20, 4 * block_bytes + (4 << 20))))

    x_spec = pl.BlockSpec((1, C, tl), lambda b, l: (b, 0, l))
    gate_spec = pl.BlockSpec((1, C, 1), lambda b, l: (b, 0, 0))
    wspecs = [pl.BlockSpec((C, inter), lambda b, l: (0, 0)),
              pl.BlockSpec((1, inter), lambda b, l: (0, 0)),
              pl.BlockSpec((inter, C), lambda b, l: (0, 0)),
              pl.BlockSpec((1, C), lambda b, l: (0, 0))]

    # Pass 1: masked mean over L + tiny gate MLP (BN folded) -> (B, C, 1) gate.
    gate = pl.pallas_call(
        functools.partial(_reduce_gate_kernel, inv_len=inv_len, length=L, tl=tl),
        out_shape=jax.ShapeDtypeStruct((B, C, 1), jnp.float32),
        grid_spec=pltpu.PrefetchScalarGridSpec(
            num_scalar_prefetch=0,
            grid=grid,
            in_specs=[x_spec] + wspecs,
            out_specs=gate_spec,
            scratch_shapes=[pltpu.VMEM((1, C), jnp.float32)]),
        compiler_params=pltpu.CompilerParams(
            dimension_semantics=("parallel", "arbitrary"),
            vmem_limit_bytes=vmem_limit),
    )(x, w1f, bias1, w2f, bias2)

    # Pass 2: stream x again and apply the gate (fully parallel grid).
    out = pl.pallas_call(
        _apply_gate_kernel,
        out_shape=jax.ShapeDtypeStruct((B, C, L), x.dtype),
        grid_spec=pltpu.PrefetchScalarGridSpec(
            num_scalar_prefetch=0,
            grid=grid,
            in_specs=[x_spec, gate_spec],
            out_specs=x_spec),
        compiler_params=pltpu.CompilerParams(
            dimension_semantics=("parallel", "parallel"),
            vmem_limit_bytes=vmem_limit),
    )(x, gate)
    return out


# ----------------------------------------------------------------------------
# Pure-JAX reference and deterministic parameter init
# ----------------------------------------------------------------------------
def conv_attention_ref(x, params):
    (w1, g1, b1, m1, v1, w2, g2, b2, m2, v2) = params
    pooled = jnp.mean(x, axis=-1)                                   # (B, C)
    h = pooled @ w1.T
    h = (h - m1) / jnp.sqrt(v1 + BN_EPS) * g1 + b1
    h = jnp.where(h >= 0, h, LEAKY_SLOPE * h)
    h2 = h @ w2.T
    h2 = (h2 - m2) / jnp.sqrt(v2 + BN_EPS) * g2 + b2
    h2 = jnp.where(h2 >= 0, h2, LEAKY_SLOPE * h2)
    gate = jax.nn.sigmoid(h2)
    return x * gate[:, :, None]


def init_params(key, in_channels, channels, reduction_factor=4):
    inter = max(in_channels // reduction_factor, 16)
    keys = jax.random.split(key, 10)
    # Conv1d weights are (out, in, 1); k=1 so keep them as (out, in).
    w1 = 0.1 * jax.random.normal(keys[0], (inter, in_channels), jnp.float32)
    w2 = 0.1 * jax.random.normal(keys[1], (channels, inter), jnp.float32)
    g1 = 1.0 + 0.05 * jax.random.normal(keys[2], (inter,), jnp.float32)
    b1 = 0.05 * jax.random.normal(keys[3], (inter,), jnp.float32)
    m1 = 0.05 * jax.random.normal(keys[4], (inter,), jnp.float32)
    v1 = 1.0 + 0.1 * jax.random.uniform(keys[5], (inter,), jnp.float32)
    g2 = 1.0 + 0.05 * jax.random.normal(keys[6], (channels,), jnp.float32)
    b2 = 0.05 * jax.random.normal(keys[7], (channels,), jnp.float32)
    m2 = 0.05 * jax.random.normal(keys[8], (channels,), jnp.float32)
    v2 = 1.0 + 0.1 * jax.random.uniform(keys[9], (channels,), jnp.float32)
    return (w1, g1, b1, m1, v1, w2, g2, b2, m2, v2)


if __name__ == "__main__":
    key = jax.random.PRNGKey(0)
    k1, k2, k3, k4, k5, k6 = jax.random.split(key, 6)

    # 1) Small shapes consistent with the module (channels == in_channels).
    B, C, L = 2, 4, 16
    x = jax.random.normal(k1, (B, C, L), jnp.float32)
    params = init_params(k2, in_channels=C, channels=C, reduction_factor=4)
    out = jax.block_until_ready(conv_attention(x, params))
    ref = conv_attention_ref(x, params)
    assert out.shape == x.shape and out.dtype == x.dtype
    assert jnp.allclose(out, ref, atol=1e-5, rtol=1e-5), "small-shape mismatch"

    # 2) Fused path with a ragged last B-tile (B=3 -> tb=2, grid=2).
    B2, C2, L2 = 3, 8, 2000
    x2 = jax.random.normal(k3, (B2, C2, L2), jnp.float32)
    params2 = init_params(k4, in_channels=C2, channels=C2, reduction_factor=4)
    out2 = jax.block_until_ready(conv_attention(x2, params2))
    ref2 = conv_attention_ref(x2, params2)
    assert jnp.allclose(out2, ref2, atol=1e-4, rtol=1e-4), "fused-path mismatch"

    # 3) Force the two-pass streaming path (tiny block budget) to exercise the
    #    masked ragged-L accumulation and gate-apply kernels.
    B3, C3, L3 = 2, 8, 2000
    x3 = jax.random.normal(k5, (B3, C3, L3), jnp.float32)
    params3 = init_params(k6, in_channels=C3, channels=C3, reduction_factor=4)
    out3 = jax.block_until_ready(
        conv_attention(x3, params3, block_budget_bytes=16 * 1024))
    ref3 = conv_attention_ref(x3, params3)
    assert jnp.allclose(out3, ref3, atol=1e-4, rtol=1e-4), "two-pass mismatch"

    print("KERNEL_OK")
</pallas_src>

<mosaic_0001>
module attributes {stable_mosaic.version = 11 : i64} {
  func.func @_fused_kernel(%arg0: i32, %arg1: memref<1x4x16xf32, #tpu.memory_space<vmem>>, %arg2: memref<4x16xf32, #tpu.memory_space<vmem>>, %arg3: memref<1x16xf32, #tpu.memory_space<vmem>>, %arg4: memref<16x4xf32, #tpu.memory_space<vmem>>, %arg5: memref<1x4xf32, #tpu.memory_space<vmem>>, %arg6: memref<1x4x16xf32, #tpu.memory_space<vmem>>) attributes {dimension_semantics = [#tpu.dimension_semantics<parallel>], iteration_bounds = array<i64: 2>, scalar_prefetch = 0 : i64, scratch_operands = 0 : i64, tpu.core_type = #tpu.core_type<tc>, window_params = [{transform_indices = @transform_0, window_bounds = array<i64: 1, 4, 16>}, {pipeline_mode = #tpu.pipeline_mode<synchronous>, transform_indices = @transform_1, window_bounds = array<i64: 4, 16>}, {pipeline_mode = #tpu.pipeline_mode<synchronous>, transform_indices = @transform_2, window_bounds = array<i64: 1, 16>}, {pipeline_mode = #tpu.pipeline_mode<synchronous>, transform_indices = @transform_3, window_bounds = array<i64: 16, 4>}, {pipeline_mode = #tpu.pipeline_mode<synchronous>, transform_indices = @transform_4, window_bounds = array<i64: 1, 4>}, {transform_indices = @transform_5, window_bounds = array<i64: 1, 4, 16>}]} {
    %c0 = arith.constant 0 : index
    %c0_0 = arith.constant 0 : index
    %c0_1 = arith.constant 0 : index
    %0 = vector.load %arg1[%c0, %c0_0, %c0_1] : memref<1x4x16xf32, #tpu.memory_space<vmem>>, vector<1x4x16xf32>
    %cst = arith.constant dense<0.000000e+00> : vector<1x4xf32>
    %1 = vector.multi_reduction <add>, %0, %cst [2] : vector<1x4x16xf32> to vector<1x4xf32>
    %cst_2 = arith.constant 6.250000e-02 : f32
    %2 = vector.broadcast %cst_2 : f32 to vector<1x4xf32>
    %3 = arith.mulf %1, %2 : vector<1x4xf32>
    %c0_3 = arith.constant 0 : index
    %c0_4 = arith.constant 0 : index
    %4 = vector.load %arg2[%c0_3, %c0_4] : memref<4x16xf32, #tpu.memory_space<vmem>>, vector<4x16xf32>
    %cst_5 = arith.constant dense<0.000000e+00> : vector<1x16xf32>
    %5 = tpu.matmul %3, %4, %cst_5 {dimension_numbers = #tpu.dot_dimension_numbers<[1], [0], [0], [1], [0, 0, 1, 1], [], []>} : vector<1x4xf32>, vector<4x16xf32>, vector<1x16xf32> -> vector<1x16xf32>
    %c0_6 = arith.constant 0 : index
    %c0_7 = arith.constant 0 : index
    %6 = vector.load %arg3[%c0_6, %c0_7] : memref<1x16xf32, #tpu.memory_space<vmem>>, vector<1x16xf32>
    %7 = arith.addf %5, %6 : vector<1x16xf32>
    %cst_8 = arith.constant 0.000000e+00 : f32
    %8 = vector.broadcast %cst_8 : f32 to vector<1x16xf32>
    %9 = arith.cmpf oge, %7, %8 : vector<1x16xf32>
    %cst_9 = arith.constant 0.00999999977 : f32
    %10 = vector.broadcast %cst_9 : f32 to vector<1x16xf32>
    %11 = arith.mulf %10, %7 : vector<1x16xf32>
    %12 = arith.select %9, %7, %11 : vector<1x16xi1>, vector<1x16xf32>
    %c0_10 = arith.constant 0 : index
    %c0_11 = arith.constant 0 : index
    %13 = vector.load %arg4[%c0_10, %c0_11] : memref<16x4xf32, #tpu.memory_space<vmem>>, vector<16x4xf32>
    %cst_12 = arith.constant dense<0.000000e+00> : vector<1x4xf32>
    %14 = tpu.matmul %12, %13, %cst_12 {dimension_numbers = #tpu.dot_dimension_numbers<[1], [0], [0], [1], [0, 0, 1, 1], [], []>} : vector<1x16xf32>, vector<16x4xf32>, vector<1x4xf32> -> vector<1x4xf32>
    %c0_13 = arith.constant 0 : index
    %c0_14 = arith.constant 0 : index
    %15 = vector.load %arg5[%c0_13, %c0_14] : memref<1x4xf32, #tpu.memory_space<vmem>>, vector<1x4xf32>
    %16 = arith.addf %14, %15 : vector<1x4xf32>
    %cst_15 = arith.constant 0.000000e+00 : f32
    %17 = vector.broadcast %cst_15 : f32 to vector<1x4xf32>
    %18 = arith.cmpf oge, %16, %17 : vector<1x4xf32>
    %cst_16 = arith.constant 0.00999999977 : f32
    %19 = vector.broadcast %cst_16 : f32 to vector<1x4xf32>
    %20 = arith.mulf %19, %16 : vector<1x4xf32>
    %21 = arith.select %18, %16, %20 : vector<1x4xi1>, vector<1x4xf32>
    %22 = arith.negf %21 : vector<1x4xf32>
    %23 = math.exp %22 : vector<1x4xf32>
    %cst_17 = arith.constant 1.000000e+00 : f32
    %24 = vector.broadcast %cst_17 : f32 to vector<1x4xf32>
    %25 = arith.addf %24, %23 : vector<1x4xf32>
    %26 = arith.divf %24, %25 : vector<1x4xf32>
    %27 = vector.shape_cast %26 : vector<1x4xf32> to vector<1x4x1xf32>
    %28 = vector.broadcast %27 : vector<1x4x1xf32> to vector<1x4x16xf32>
    %29 = arith.mulf %0, %28 : vector<1x4x16xf32>
    %c0_18 = arith.constant 0 : index
    %c0_19 = arith.constant 0 : index
    %c0_20 = arith.constant 0 : index
    %30 = vector.load %arg6[%c0_18, %c0_19, %c0_20] : memref<1x4x16xf32, #tpu.memory_space<vmem>>, vector<1x4x16xf32>
    tpu.vector_store %arg6[%c0_18, %c0_19, %c0_20], %29 {strides = array<i32>} : memref<1x4x16xf32, #tpu.memory_space<vmem>>, vector<1x4x16xf32>,
    return
  }
  func.func @transform_0(%arg0: i32) -> (i32, i32, i32) {
    %c0_i32 = arith.constant 0 : i32
    %c0_i32_0 = arith.constant 0 : i32
    %c0_i32_1 = arith.constant 0 : i32
    return %arg0, %c0_i32, %c0_i32_0 : i32, i32, i32
  }
  func.func @transform_1(%arg0: i32) -> (i32, i32) {
    %c0_i32 = arith.constant 0 : i32
    %c0_i32_0 = arith.constant 0 : i32
    %c0_i32_1 = arith.constant 0 : i32
    return %c0_i32, %c0_i32_0 : i32, i32
  }
  func.func @transform_2(%arg0: i32) -> (i32, i32) {
    %c0_i32 = arith.constant 0 : i32
    %c0_i32_0 = arith.constant 0 : i32
    %c0_i32_1 = arith.constant 0 : i32
    return %c0_i32, %c0_i32_0 : i32, i32
  }
  func.func @transform_3(%arg0: i32) -> (i32, i32) {
    %c0_i32 = arith.constant 0 : i32
    %c0_i32_0 = arith.constant 0 : i32
    %c0_i32_1 = arith.constant 0 : i32
    return %c0_i32, %c0_i32_0 : i32, i32
  }
  func.func @transform_4(%arg0: i32) -> (i32, i32) {
    %c0_i32 = arith.constant 0 : i32
    %c0_i32_0 = arith.constant 0 : i32
    %c0_i32_1 = arith.constant 0 : i32
    return %c0_i32, %c0_i32_0 : i32, i32
  }
  func.func @transform_5(%arg0: i32) -> (i32, i32, i32) {
    %c0_i32 = arith.constant 0 : i32
    %c0_i32_0 = arith.constant 0 : i32
    %c0_i32_1 = arith.constant 0 : i32
    return %arg0, %c0_i32, %c0_i32_0 : i32, i32, i32
  }
}

</mosaic_0001>

<llo_original>
// kernel: tpu_custom_call.1
$region0: #{tpu_custom_call.1}
  #allocation0 [shape = 'u32[]', space=smem, size = 0x4, offset = 0x4, fixed_abs, tag = 'smem constant byte address 0x4 - core index']
  #allocation1 [shape = 'u32[144,128]{1,0:T(1,128)}', space=vmem, size = 0x12000, scoped, tag = 'internal scratch']
  %s0 = inlined_call_operand.vmem [shape: f32[2,4,16], index: 0, kind: input, shape index: {}]
  %s1 = inlined_call_operand.vmem [shape: f32[4,16], index: 1, kind: input, shape index: {}]
  %s2 = inlined_call_operand.vmem [shape: f32[1,16], index: 2, kind: input, shape index: {}]
  %s3 = inlined_call_operand.vmem [shape: f32[16,4], index: 3, kind: input, shape index: {}]
  %s4 = inlined_call_operand.vmem [shape: f32[1,4], index: 4, kind: input, shape index: {}]
  %s5 = inlined_call_operand.hbm [shape: f32[2,4,16], index: 5, kind: output, shape index: {}]
  %s6 = sld [smem:[#allocation0]]
  $region53: #{tpu_custom_call.1} parent=0
    _
  %s8 = ssub.s32 1, %s6
  %s9 = scalar_select 0, %s8, %s6
  $region1: #{tpu_custom_call.1} parent=0
    #allocation2 [shape = 'u8[4096]{0}', space=vmem, size = 0x1000, scoped, tag = 'output window, operand 0']
    #allocation3 [shape = 's32[2]{0}', space=sflag, size = 0x8, scoped, tag = 'scoped memory for tpu_custom_call.1']
    %10 = vsyncpa [#allocation3], 0
    %s11 = scalar_lea.sflag [#allocation3], 1
    %12 = vsyncpa %s11, 0
    loop: start=0, step=1, limit=4
    $region2: #{tpu_custom_call.1} parent=1 // loop_pre_header
      _
    $region3: #{tpu_custom_call.1} parent=1 // loop_header
      %s14 = sphi 0, %s18
      %p15 = scmp.ge.s32.totalorder %s14, 4
      %s24 = sphi 0, %s26
      %s27 = sphi 0, %s24
      %s28 = sphi 0, %s27
      %s44 = sphi 0, %s28
      %s48 = sphi 0, %s48
      %s50 = sphi 0, %s48
      %s51 = sphi 0, %s50
      %s65 = sphi 0, %s51
      %s69 = sphi 0, %s69
      %s71 = sphi 0, %s69
      %s72 = sphi 0, %s71
      %s86 = sphi 0, %s72
      %s90 = sphi 0, %s90
      %s92 = sphi 0, %s90
      %s93 = sphi 0, %s92
      %s107 = sphi 0, %s93
      %s111 = sphi 0, %s111
      %s113 = sphi 0, %s111
      %s114 = sphi 0, %s113
      %s128 = sphi 0, %s114
      %s134 = sphi 0, %s136
      %s137 = sphi 0, %s134
      %s138 = sphi 0, %s137
      %s154 = sphi 0, %s138
    $region4: #{tpu_custom_call.1} parent=1 // loop_header_branch
      %17 = sbr.rel (%p15) target = $region8
    $region5: #{tpu_custom_call.1} parent=1 // loop_body
      %s19 = ssub.s32 %s14, 1
      %s20 = ssub.s32 %s14, 2
      %s21 = sadd.s32 %s14, 1
      %s22 = ssub.s32 %s14, %s21
      %p23 = scmp.eq.s32.totalorder %s22, 0
      %s25 = sadd.s32 %s24, 1
      %s26 = scalar_select %p23, %s24, %s25
      %p29 = pneg %p23
      %p30 = scmp.eq.s32.totalorder %s14, 1
      %p31 = por %p29, %p30
      %p32 = scmp.ne.s32.totalorder %s24, %s27
      %p33 = scmp.eq.s32.totalorder %s14, 0
      %p34 = por %p32, %p33
      %p35 = scmp.ne.s32.totalorder %s24, %s27
      %p36 = scmp.eq.s32.totalorder %s19, 1
      %p37 = por %p35, %p36
      %p38 = scmp.ne.s32.totalorder %s27, %s28
      %p39 = scmp.eq.s32.totalorder %s19, 0
      %p40 = por %p38, %p39
      %p41 = scmp.ne.s32.totalorder %s27, %s28
      %p42 = scmp.eq.s32.totalorder %s20, 1
      %p43 = por %p41, %p42
      %p45 = scmp.ne.s32.totalorder %s28, %s44
      %p46 = scmp.eq.s32.totalorder %s20, 0
      %p47 = por %p45, %p46
      %s49 = sadd.s32 %s48, 1
      %p52 = scmp.eq.s32.totalorder %s14, 1
      %p53 = scmp.ne.s32.totalorder %s48, %s50
      %p54 = scmp.eq.s32.totalorder %s14, 0
      %p55 = por %p53, %p54
      %p56 = scmp.ne.s32.totalorder %s48, %s50
      %p57 = scmp.eq.s32.totalorder %s19, 1
      %p58 = por %p56, %p57
      %p59 = scmp.ne.s32.totalorder %s50, %s51
      %p60 = scmp.eq.s32.totalorder %s19, 0
      %p61 = por %p59, %p60
      %p62 = scmp.ne.s32.totalorder %s50, %s51
      %p63 = scmp.eq.s32.totalorder %s20, 1
      %p64 = por %p62, %p63
      %p66 = scmp.ne.s32.totalorder %s51, %s65
      %p67 = scmp.eq.s32.totalorder %s20, 0
      %p68 = por %p66, %p67
      %s70 = sadd.s32 %s69, 1
      %p73 = scmp.eq.s32.totalorder %s14, 1
      %p74 = scmp.ne.s32.totalorder %s69, %s71
      %p75 = scmp.eq.s32.totalorder %s14, 0
      %p76 = por %p74, %p75
      %p77 = scmp.ne.s32.totalorder %s69, %s71
      %p78 = scmp.eq.s32.totalorder %s19, 1
      %p79 = por %p77, %p78
      %p80 = scmp.ne.s32.totalorder %s71, %s72
      %p81 = scmp.eq.s32.totalorder %s19, 0
      %p82 = por %p80, %p81
      %p83 = scmp.ne.s32.totalorder %s71, %s72
      %p84 = scmp.eq.s32.totalorder %s20, 1
      %p85 = por %p83, %p84
      %p87 = scmp.ne.s32.totalorder %s72, %s86
      %p88 = scmp.eq.s32.totalorder %s20, 0
      %p89 = por %p87, %p88
      %s91 = sadd.s32 %s90, 1
      %p94 = scmp.eq.s32.totalorder %s14, 1
      %p95 = scmp.ne.s32.totalorder %s90, %s92
      %p96 = scmp.eq.s32.totalorder %s14, 0
      %p97 = por %p95, %p96
      %p98 = scmp.ne.s32.totalorder %s90, %s92
      %p99 = scmp.eq.s32.totalorder %s19, 1
      %p100 = por %p98, %p99
      %p101 = scmp.ne.s32.totalorder %s92, %s93
      %p102 = scmp.eq.s32.totalorder %s19, 0
      %p103 = por %p101, %p102
      %p104 = scmp.ne.s32.totalorder %s92, %s93
      %p105 = scmp.eq.s32.totalorder %s20, 1
      %p106 = por %p104, %p105
      %p108 = scmp.ne.s32.totalorder %s93, %s107
      %p109 = scmp.eq.s32.totalorder %s20, 0
      %p110 = por %p108, %p109
      %s112 = sadd.s32 %s111, 1
      %p115 = scmp.eq.s32.totalorder %s14, 1
      %p116 = scmp.ne.s32.totalorder %s111, %s113
      %p117 = scmp.eq.s32.totalorder %s14, 0
      %p118 = por %p116, %p117
      %p119 = scmp.ne.s32.totalorder %s111, %s113
      %p120 = scmp.eq.s32.totalorder %s19, 1
      %p121 = por %p119, %p120
      %p122 = scmp.ne.s32.totalorder %s113, %s114
      %p123 = scmp.eq.s32.totalorder %s19, 0
      %p124 = por %p122, %p123
      %p125 = scmp.ne.s32.totalorder %s113, %s114
      %p126 = scmp.eq.s32.totalorder %s20, 1
      %p127 = por %p125, %p126
      %p129 = scmp.ne.s32.totalorder %s114, %s128
      %p130 = scmp.eq.s32.totalorder %s20, 0
      %p131 = por %p129, %p130
      %s132 = ssub.s32 %s14, %s21
      %p133 = scmp.eq.s32.totalorder %s132, 0
      %s135 = sadd.s32 %s134, 1
      %s136 = scalar_select %p133, %s134, %s135
      %p139 = pneg %p133
      %p140 = scmp.eq.s32.totalorder %s14, 1
      %p141 = por %p139, %p140
      %p142 = scmp.ne.s32.totalorder %s134, %s137
      %p143 = scmp.eq.s32.totalorder %s14, 0
      %p144 = por %p142, %p143
      %p145 = scmp.ne.s32.totalorder %s134, %s137
      %p146 = scmp.eq.s32.totalorder %s19, 1
      %p147 = por %p145, %p146
      %p148 = scmp.ne.s32.totalorder %s137, %s138
      %p149 = scmp.eq.s32.totalorder %s19, 0
      %p150 = por %p148, %p149
      %p151 = scmp.ne.s32.totalorder %s137, %s138
      %p152 = scmp.eq.s32.totalorder %s20, 1
      %p153 = por %p151, %p152
      %p155 = scmp.ne.s32.totalorder %s138, %s154
      %p156 = scmp.eq.s32.totalorder %s20, 0
      %p157 = por %p155, %p156
      %p158 = scmp.le.s32.totalorder 1, %s14
      %p159 = scmp.lt.s32.totalorder %s14, 3
      %p160 = pnand %p158, %p159
      %p161 = pneg %p160
      // Predicated region
      $region9: #{tpu_custom_call.1} parent=5 // pred_check
        _
      $region10: #{tpu_custom_call.1} parent=5 // pred_check_branch
        %163 = sbr.rel (%p160) target = $region12
      $region11: #{tpu_custom_call.1} parent=5 // pred_region
        %s164 = ssub.s32 %s14, 1
        // Predicated region
        $region13: #{tpu_custom_call.1} parent=11 // pred_check
          %p165 = pneg %p61
        $region14: #{tpu_custom_call.1} parent=11 // pred_check_branch
          %167 = sbr.rel (%p165) target = $region16
        $region15: #{tpu_custom_call.1} parent=11 // pred_region
          _
        $region16: #{tpu_custom_call.1} parent=11 // pred_fallthru
          _
        // Predicated region
        $region17: #{tpu_custom_call.1} parent=11 // pred_check
          %p168 = pneg %p82
        $region18: #{tpu_custom_call.1} parent=11 // pred_check_branch
          %170 = sbr.rel (%p168) target = $region20
        $region19: #{tpu_custom_call.1} parent=11 // pred_region
          _
        $region20: #{tpu_custom_call.1} parent=11 // pred_fallthru
          _
        // Predicated region
        $region21: #{tpu_custom_call.1} parent=11 // pred_check
          %p171 = pneg %p103
        $region22: #{tpu_custom_call.1} parent=11 // pred_check_branch
          %173 = sbr.rel (%p171) target = $region24
        $region23: #{tpu_custom_call.1} parent=11 // pred_region
          _
        $region24: #{tpu_custom_call.1} parent=11 // pred_fallthru
          _
        // Predicated region
        $region25: #{tpu_custom_call.1} parent=11 // pred_check
          %p174 = pneg %p124
        $region26: #{tpu_custom_call.1} parent=11 // pred_check_branch
          %176 = sbr.rel (%p174) target = $region28
        $region27: #{tpu_custom_call.1} parent=11 // pred_region
          _
        $region28: #{tpu_custom_call.1} parent=11 // pred_fallthru
          _
      $region12: #{tpu_custom_call.1} parent=5 // pred_fallthru
        _
      %p177 = scmp.lt.s32.totalorder %s14, 2
      // Predicated region
      $region29: #{tpu_custom_call.1} parent=5 // pred_check
        %p178 = pneg %p177
      $region30: #{tpu_custom_call.1} parent=5 // pred_check_branch
        %180 = sbr.rel (%p178) target = $region32
      $region31: #{tpu_custom_call.1} parent=5 // pred_region
        // Predicated region
        $region33: #{tpu_custom_call.1} parent=31 // pred_check
          %p181 = pneg %p34
        $region34: #{tpu_custom_call.1} parent=31 // pred_check_branch
          %183 = sbr.rel (%p181) target = $region36
        $region35: #{tpu_custom_call.1} parent=31 // pred_region
          %p184 = scmp.lt.s32.totalorder %s14, 1
          %s185 = scalar_select %p184, %s14, 1
          %s186 = smul.addr %s185, 4
          %s187 = scalar_lea.vmem %s0, %s186
        $region36: #{tpu_custom_call.1} parent=31 // pred_fallthru
          _
      $region32: #{tpu_custom_call.1} parent=5 // pred_fallthru
        _
      %p188 = scmp.le.s32.totalorder 1, %s14
      %p189 = scmp.lt.s32.totalorder %s14, 3
      %p190 = pnand %p188, %p189
      %p191 = pneg %p190
      // Predicated region
      $region37: #{tpu_custom_call.1} parent=5 // pred_check
        _
      $region38: #{tpu_custom_call.1} parent=5 // pred_check_branch
        %193 = sbr.rel (%p190) target = $region40
      $region39: #{tpu_custom_call.1} parent=5 // pred_region
        %s194 = ssub.s32 %s14, 1
        %p195 = scmp.lt.s32.totalorder %s19, 1
        %s196 = scalar_select %p195, %s19, 1
        %s197 = smul.addr %s196, 4
        %s198 = scalar_lea.vmem %s0, %s197
        %p199 = pneg %p40
        %p200 = pneg %p37
        %p201 = pneg %p61
        %p202 = pneg %p58
        %p203 = pneg %p82
        %p204 = pneg %p79
        %p205 = pneg %p103
        %p206 = pneg %p100
        %p207 = pneg %p124
        %p208 = pneg %p121
        %p209 = pneg %p150
        %p210 = pneg %p147
        %s211 = sand.u32 %s137, 1
        %s212 = scalar_lea.sflag [#allocation3], %s211
        %s213 = sand.u32 %s137, 1
        %s214 = smul.addr %s213, 4
        %s215 = scalar_lea.vmem [#allocation2], %s214
        %p216 = scmp.lt.s32.totalorder %s19, 1
        %s217 = scalar_select %p216, %s19, 1
        %s218 = smul.addr %s217, 4
        %s219 = scalar_lea.vmem %s0, %s218
        %v220 = vld [vmem:[%s219] sm:$0xf]
        %vm221 = vcmask 125952
        %v222 = vsel %vm221, %v220, 0.0
        %223 = vadd.xlane.f32.xlu0 %v222
        %v224 = vpop.xlane.xlu0 %223
        %v225 = vmul.f32 %v224, 0.0625
        %v226 = vld [vmem:[%s1] sm:$0xf]
        %v227 = vld [vmem:[%s2] sm:$0x1]
        %v229 = vlaneseq
        %v230 = vand.u32 %v229, 127
        %v231 = vlaneseq
        %v232 = vshrl.u32 %v231, 7
        %v233 = vsub.s32 %v230, %v232
        %v234 = vrot.slane %v225, %v233
        %vm235 = vcmask 31744
        %v236 = vsel %vm235, %v234, 0
        %vm238 = vcmask 1043456
        %v240 = vsel %vm238, %v226, 0
        %242 = vmatprep.subr.mxu0 0.0
        %243 = vmatpush1.msra.mxu0 %v240
        %244 = vmatprep.subr.mxu0 0.0
        %245 = vmatpush1.msra.mxu0 0.0
        %246 = vmatprep.subr.mxu0 0.0
        %247 = vmatpush1.msra.mxu0 0.0
        %248 = vmatprep.subr.mxu0 0.0
        %249 = vmatpush1.msra.mxu0 0.0
        %250 = vmatprep.subr.mxu0 0.0
        %251 = vmatpush1.msra.mxu0 0.0
        %252 = vmatprep.subr.mxu0 0.0
        %253 = vmatpush1.msra.mxu0 0.0
        %254 = vmatprep.subr.mxu0 0.0
        %255 = vmatpush1.msra.mxu0 0.0
        %256 = vmatprep.subr.mxu0 0.0
        %257 = vmatpush1.msra.mxu0 0.0
        %258 = vmatprep.subr.mxu0 0.0
        %259 = vmatpush1.msra.mxu0 0.0
        %260 = vmatprep.subr.mxu0 0.0
        %261 = vmatpush1.msra.mxu0 0.0
        %262 = vmatprep.subr.mxu0 0.0
        %263 = vmatpush1.msra.mxu0 0.0
        %264 = vmatprep.subr.mxu0 0.0
        %265 = vmatpush1.msra.mxu0 0.0
        %266 = vmatprep.subr.mxu0 0.0
        %267 = vmatpush1.msra.mxu0 0.0
        %268 = vmatprep.subr.mxu0 0.0
        %269 = vmatpush1.msra.mxu0 0.0
        %270 = vmatprep.subr.mxu0 0.0
        %271 = vmatpush1.msra.mxu0 0.0
        %272 = vmatprep.subr.mxu0 0.0
        %273 = vmatpush1.msra.mxu0 0.0
        %274 = vmatprep.subr.mxu0 0.0
        %275 = vmatpush1.msra.mxu0 0.0
        %276 = vmatprep.subr.mxu0 0.0
        %277 = vmatpush1.msra.mxu0 0.0
        %278 = vmatprep.subr.mxu0 0.0
        %279 = vmatpush1.msra.mxu0 0.0
        %280 = vmatprep.subr.mxu0 0.0
        %281 = vmatpush1.msra.mxu0 0.0
        %282 = vmatprep.subr.mxu0 0.0
        %283 = vmatpush1.msra.mxu0 0.0
        %284 = vmatprep.subr.mxu0 0.0
        %285 = vmatpush1.msra.mxu0 0.0
        %286 = vmatprep.subr.mxu0 0.0
        %287 = vmatpush1.msra.mxu0 0.0
        %288 = vmatprep.subr.mxu0 0.0
        %289 = vmatpush1.msra.mxu0 0.0
        %290 = vmatprep.subr.mxu0 0.0
        %291 = vmatpush1.msra.mxu0 0.0
        %292 = vmatprep.subr.mxu0 0.0
        %293 = vmatpush1.msra.mxu0 0.0
        %294 = vmatprep.subr.mxu0 0.0
        %295 = vmatpush1.msra.mxu0 0.0
        %296 = vmatprep.subr.mxu0 0.0
        %297 = vmatpush1.msra.mxu0 0.0
        %298 = vmatprep.subr.mxu0 0.0
        %299 = vmatpush1.msra.mxu0 0.0
        %300 = vmatprep.subr.mxu0 0.0
        %301 = vmatpush1.msra.mxu0 0.0
        %302 = vmatprep.subr.mxu0 0.0
        %303 = vmatpush1.msra.mxu0 0.0
        %304 = vmatprep.subr.mxu0 0.0
        %305 = vmatpush1.msra.mxu0 0.0
        %306 = vmatprep.mubr.f32.mxu0 0.0
        %307 = vmatmul.mubr.f32.gmra.mrb[0].mxu0 %v236
        %v308 = vpop.f32.mrb[0].mxu0
        %v309 = vadd.f32 %v227, %v308
        %v310 = vpop.f32.mrb[0].mxu0
        %311 = vdwg.mxu0
        %vm312 = vcmp.ge.f32.partialorder %v309, 0.0
        %v313 = vmul.f32 %v309, 0.01
        %v314 = vsel %vm312, %v309, %v313
        %v315 = vld [vmem:[%s3] sm:$0xff]
        %v316 = vld [vmem:[%s3 + $0x8] sm:$0xff]
        %v317 = vld [vmem:[%s4] sm:$0x1]
        %vm318 = vcmask 130048
        %v320 = vsel %vm318, %v314, 0
        %322 = vmatprep.subr.mxu0 0.0
        %323 = vmatpush1.msra.mxu0 %v315
        %324 = vmatprep.subr.mxu0 0.0
        %325 = vmatpush1.msra.mxu0 %v316
        %326 = vmatprep.subr.mxu0 0.0
        %327 = vmatpush1.msra.mxu0 0.0
        %328 = vmatprep.subr.mxu0 0.0
        %329 = vmatpush1.msra.mxu0 0.0
        %330 = vmatprep.subr.mxu0 0.0
        %331 = vmatpush1.msra.mxu0 0.0
        %332 = vmatprep.subr.mxu0 0.0
        %333 = vmatpush1.msra.mxu0 0.0
        %334 = vmatprep.subr.mxu0 0.0
        %335 = vmatpush1.msra.mxu0 0.0
        %336 = vmatprep.subr.mxu0 0.0
        %337 = vmatpush1.msra.mxu0 0.0
        %338 = vmatprep.subr.mxu0 0.0
        %339 = vmatpush1.msra.mxu0 0.0
        %340 = vmatprep.subr.mxu0 0.0
        %341 = vmatpush1.msra.mxu0 0.0
        %342 = vmatprep.subr.mxu0 0.0
        %343 = vmatpush1.msra.mxu0 0.0
        %344 = vmatprep.subr.mxu0 0.0
        %345 = vmatpush1.msra.mxu0 0.0
        %346 = vmatprep.subr.mxu0 0.0
        %347 = vmatpush1.msra.mxu0 0.0
        %348 = vmatprep.subr.mxu0 0.0
        %349 = vmatpush1.msra.mxu0 0.0
        %350 = vmatprep.subr.mxu0 0.0
        %351 = vmatpush1.msra.mxu0 0.0
        %352 = vmatprep.subr.mxu0 0.0
        %353 = vmatpush1.msra.mxu0 0.0
        %354 = vmatprep.subr.mxu0 0.0
        %355 = vmatpush1.msra.mxu0 0.0
        %356 = vmatprep.subr.mxu0 0.0
        %357 = vmatpush1.msra.mxu0 0.0
        %358 = vmatprep.subr.mxu0 0.0
        %359 = vmatpush1.msra.mxu0 0.0
        %360 = vmatprep.subr.mxu0 0.0
        %361 = vmatpush1.msra.mxu0 0.0
        %362 = vmatprep.subr.mxu0 0.0
        %363 = vmatpush1.msra.mxu0 0.0
        %364 = vmatprep.subr.mxu0 0.0
        %365 = vmatpush1.msra.mxu0 0.0
        %366 = vmatprep.subr.mxu0 0.0
        %367 = vmatpush1.msra.mxu0 0.0
        %368 = vmatprep.subr.mxu0 0.0
        %369 = vmatpush1.msra.mxu0 0.0
        %370 = vmatprep.subr.mxu0 0.0
        %371 = vmatpush1.msra.mxu0 0.0
        %372 = vmatprep.subr.mxu0 0.0
        %373 = vmatpush1.msra.mxu0 0.0
        %374 = vmatprep.subr.mxu0 0.0
        %375 = vmatpush1.msra.mxu0 0.0
        %376 = vmatprep.subr.mxu0 0.0
        %377 = vmatpush1.msra.mxu0 0.0
        %378 = vmatprep.subr.mxu0 0.0
        %379 = vmatpush1.msra.mxu0 0.0
        %380 = vmatprep.subr.mxu0 0.0
        %381 = vmatpush1.msra.mxu0 0.0
        %382 = vmatprep.subr.mxu0 0.0
        %383 = vmatpush1.msra.mxu0 0.0
        %384 = vmatprep.subr.mxu0 0.0
        %385 = vmatpush1.msra.mxu0 0.0
        %386 = vmatprep.mubr.f32.mxu0 0.0
        %387 = vmatmul.mubr.f32.gmra.mrb[0].mxu0 %v320
        %v388 = vpop.f32.mrb[0].mxu0
        %v389 = vadd.f32 %v317, %v388
        %v390 = vpop.f32.mrb[0].mxu0
        %391 = vdwg.mxu0
        %vm392 = vcmp.ge.f32.partialorder %v389, 0.0
        %v393 = vmul.f32 %v389, 0.01
        %v394 = vsel %vm392, %v389, %v393
        %v395 = vxor.u32 %v394, 2147483648
        %v396 = vmul.f32 %v395, 1.442695
        %v397 = vpow.pop %v396
        %v398 = vadd.f32 %v397, 1.0
        %v399 = vrcp.pop %v398
        %v400 = vmul.f32 1.0, %v399
        %v401 = vlaneseq
        %v402 = vshrl.u32 %v401, 7
        %v403 = vsub.s32 0, %v402
        %v404 = vrot.slane %v400, %v403
        %406 = vbcast.lane.b32.xlu0 %v404, 256
        %v407 = vpop.permute.xlu0 %406
        %v408 = vmul.f32 %v220, %v407
        %409 = vst.msk [vmem:[%s215] sm:$0xf] %vm221, %v408
        %s410 = sand.u32 %s137, 1
        %s411 = scalar_lea.sflag [#allocation3], %s410
        %s412 = sand.u32 %s137, 1
        %s413 = smul.addr %s412, 4
        %s414 = scalar_lea.vmem [#allocation2], %s413
        // Predicated region
        $region41: #{tpu_custom_call.1} parent=39 // pred_check
          %p415 = pneg %p147
        $region42: #{tpu_custom_call.1} parent=39 // pred_check_branch
          %417 = sbr.rel (%p415) target = $region44
        $region43: #{tpu_custom_call.1} parent=39 // pred_region
          %s419 = ssub.s32 64, 64
          %420 = vsyncadd %s411, %s419
          %s421 = smul.addr %s19, 64
          %s422 = scalar_lea.hbm %s5, %s421
          %s424 = sshll.u32 %s414, 4
          %s425 = int_to_ptr.vmem [resolvable:$true] %s424
          %427 = dma.vmem_to_hbm [thread:$0]  %s425, 64, %s422, %s411
        $region44: #{tpu_custom_call.1} parent=39 // pred_fallthru
          _
      $region40: #{tpu_custom_call.1} parent=5 // pred_fallthru
        _
      %p428 = scmp.le.s32.totalorder 2, %s14
      // Predicated region
      $region45: #{tpu_custom_call.1} parent=5 // pred_check
        %p429 = pneg %p428
      $region46: #{tpu_custom_call.1} parent=5 // pred_check_branch
        %431 = sbr.rel (%p429) target = $region48
      $region47: #{tpu_custom_call.1} parent=5 // pred_region
        %s432 = ssub.s32 %s14, 2
        // Predicated region
        $region49: #{tpu_custom_call.1} parent=47 // pred_check
          %p433 = pneg %p153
        $region50: #{tpu_custom_call.1} parent=47 // pred_check_branch
          %435 = sbr.rel (%p433) target = $region52
        $region51: #{tpu_custom_call.1} parent=47 // pred_region
          %s436 = sand.u32 %s138, 1
          %s437 = scalar_lea.sflag [#allocation3], %s436
          %s438 = sand.u32 %s138, 1
          %s439 = smul.addr %s438, 4
          %s440 = scalar_lea.vmem [#allocation2], %s439
          %441 = dma.done %s437, 64
        $region52: #{tpu_custom_call.1} parent=47 // pred_fallthru
          _
      $region48: #{tpu_custom_call.1} parent=5 // pred_fallthru
        _
    $region6: #{tpu_custom_call.1} parent=1 // loop_footer
      %s18 = sadd.s32 1, %s14
    $region7: #{tpu_custom_call.1} parent=1 // loop_footer_branch
      %13 = sbr.rel target = $region3
    $region8: #{tpu_custom_call.1} parent=1 // loop_exit
      _
    %442 = vsyncpa [#allocation3], 1
    %s443 = scalar_lea.sflag [#allocation3], 1
    %444 = vsyncpa %s443, 1

</llo_original>
